<compile_context>
chip_gen: v7x
topology: tpu7x:2x2x1
jax: 0.10.0
libtpu: 0.0.40
codegen_flags: <defaults>
</compile_context>

<pallas_src>
import numpy as np

import jax
import jax.numpy as jnp
from jax import lax
from jax.experimental import pallas as pl
from jax.experimental.pallas import tpu as pltpu


def _round_up(x, m):
    return (x + m - 1) // m * m


def _pick_batch_block(N, per_image_bytes, P):
    """Largest divisor of N (<= 8) whose block stays comfortably inside VMEM."""
    budget = 4 * 1024 * 1024
    nb = 1
    for d in range(1, N + 1):
        if N % d:
            continue
        if d <= 8 and d * per_image_bytes <= budget and d * P <= 4096:
            nb = d
    return nb


def _make_convblock_kernel(*, NB, K, stride, Ho, Wo, Cin, activation, batch_norm, eps):
    s = stride
    P = Ho * Wo

    def body(x_ref, w_ref, b_ref, o_ref):
        # x_ref: (NB, Hh, s, Wh, s*Cin)  stride-phase packed, spatially padded input
        # w_ref: (K*K*Cin, Cout_pad)
        # b_ref: (1, Cout_pad) or None (bias cancelled by InstanceNorm)
        # o_ref: (NB, P, Cout_pad)
        x = x_ref[...]

        # Build the im2col patch tile in VMEM from K*K static, contiguous slices.
        # sub[n, ho, wo, c] == x_pad[n, s*ho + kh, s*wo + kw, c]
        subs = []
        for kh in range(K):
            hh0, ph = kh // s, kh % s
            for kw in range(K):
                wh0, pw = kw // s, kw % s
                subs.append(
                    x[:, hh0:hh0 + Ho, ph, wh0:wh0 + Wo, pw * Cin:(pw + 1) * Cin])
        patches = jnp.concatenate(subs, axis=-1)          # (NB, Ho, Wo, K*K*Cin)
        patches = patches.reshape(NB * P, K * K * Cin)    # M = NB*P rows for the MXU

        # Single matmul, f32 accumulation.
        y = jnp.dot(patches, w_ref[...], preferred_element_type=jnp.float32)

        if b_ref is not None:                             # only when batch_norm=False
            y = y + b_ref[...]

        inv_p = 1.0 / float(P)
        for i in range(NB):                               # NB small and static
            yi = y[i * P:(i + 1) * P]                     # (P, Cout_pad)
            if batch_norm:
                # One-pass InstanceNorm2d (affine=False, biased variance, eps=1e-5).
                s1 = jnp.sum(yi, axis=0, keepdims=True)
                s2 = jnp.sum(yi * yi, axis=0, keepdims=True)
                mean = s1 * inv_p
                var = jnp.maximum(s2 * inv_p - mean * mean, 0.0)
                yi = (yi - mean) * lax.rsqrt(var + eps)
            if activation == "relu":
                yi = jnp.maximum(yi, 0.0)
            elif activation == "lrelu":
                yi = jnp.where(yi >= 0.0, yi, 0.2 * yi)
            elif activation == "tanh":
                yi = jnp.tanh(yi)
            # "no_act": passthrough
            o_ref[i] = yi.astype(o_ref.dtype)

    if batch_norm:
        def kernel(x_ref, w_ref, o_ref):
            body(x_ref, w_ref, None, o_ref)
        return kernel
    return body


def conv_block(x_nchw, weight, bias, *, stride=2, padding=1, activation="relu",
               batch_norm=True, compute_dtype=jnp.bfloat16):
    """Pallas TPU implementation of ConvBlock.forward.  x_nchw: (N, Cin, H, W)."""
    if activation not in ("relu", "lrelu", "tanh", "no_act"):
        raise ValueError(f"unknown activation {activation}")

    N, Cin, H, W = x_nchw.shape
    Cout, Cin_w, K, K2 = weight.shape
    assert Cin_w == Cin and K == K2
    s = stride
    Ho = (H + 2 * padding - K) // s + 1
    Wo = (W + 2 * padding - K) // s + 1
    P = Ho * Wo
    Kdim = K * K * Cin
    Coutp = _round_up(Cout, 128)                 # lane-dense output / MXU N dim

    # ---- host-side layout plumbing (one transpose, one pad, pure reshapes) ----------
    # TODO(synk): if the surrounding model can run NHWC end-to-end, drop the two
    # NCHW<->NHWC transposes below (each is an extra HBM pass on a mem-bound op).
    x_nhwc = jnp.transpose(x_nchw, (0, 2, 3, 1))
    Hpp = _round_up(H + 2 * padding, s)
    Wpp = _round_up(W + 2 * padding, s)
    x_pad = jnp.pad(x_nhwc, ((0, 0),
                             (padding, Hpp - H - padding),
                             (padding, Wpp - W - padding),
                             (0, 0)))
    Hh, Wh = Hpp // s, Wpp // s
    # Stride-phase packing (pure reshape): [n, hh, ph, wh, pw*Cin+c] == x_pad[n, s*hh+ph, s*wh+pw, c]
    x_packed = x_pad.reshape(N, Hh, s, Wh, s * Cin).astype(compute_dtype)

    # Weight (Cout, Cin, Kh, Kw) -> (Kh*Kw*Cin, Cout), matching in-kernel patch order,
    # zero-padded to Cout_pad columns.
    w_mat = jnp.transpose(weight, (2, 3, 1, 0)).reshape(Kdim, Cout)
    w_mat = jnp.pad(w_mat, ((0, 0), (0, Coutp - Cout))).astype(compute_dtype)

    in_bytes = np.dtype(compute_dtype).itemsize
    per_image_bytes = (Hh * s * Wh * s * Cin) * in_bytes \
        + P * Kdim * in_bytes + 2 * P * Coutp * 4
    NB = _pick_batch_block(N, per_image_bytes, P)

    inputs = [x_packed, w_mat]
    in_specs = [
        pl.BlockSpec((NB, Hh, s, Wh, s * Cin), lambda b: (b, 0, 0, 0, 0)),
        pl.BlockSpec((Kdim, Coutp), lambda b: (0, 0)),
    ]
    if not batch_norm:
        # Bias only matters without InstanceNorm (the mean subtraction cancels it).
        b_mat = jnp.pad(bias.astype(jnp.float32).reshape(1, Cout),
                        ((0, 0), (0, Coutp - Cout)))
        inputs.append(b_mat)
        in_specs.append(pl.BlockSpec((1, Coutp), lambda b: (0, 0)))

    kernel = _make_convblock_kernel(NB=NB, K=K, stride=s, Ho=Ho, Wo=Wo, Cin=Cin,
                                    activation=activation, batch_norm=batch_norm,
                                    eps=1e-5)

    cost = pl.CostEstimate(
        flops=int(2 * N * P * Kdim * Coutp),
        transcendentals=int(N * P * Coutp if activation == "tanh" else 0),
        bytes_accessed=int(x_packed.size * in_bytes + w_mat.size * in_bytes
                           + N * P * Coutp * 4),
    )

    out_flat = pl.pallas_call(
        kernel,
        out_shape=jax.ShapeDtypeStruct((N, P, Coutp), jnp.float32),
        grid_spec=pltpu.PrefetchScalarGridSpec(
            num_scalar_prefetch=0,
            grid=(N // NB,),
            in_specs=in_specs,
            out_specs=pl.BlockSpec((NB, P, Coutp), lambda b: (b, 0, 0)),
        ),
        compiler_params=pltpu.CompilerParams(dimension_semantics=("parallel",)),
        cost_estimate=cost,
    )(*inputs)

    out = out_flat[:, :, :Cout].reshape(N, Ho, Wo, Cout)
    return jnp.transpose(out, (0, 3, 1, 2)).astype(x_nchw.dtype)


# ------------------------------ reference -----------------------------------
def _ref_conv_block(x, w, b, *, stride=2, padding=1, activation="relu", batch_norm=True):
    y = lax.conv_general_dilated(
        x, w, window_strides=(stride, stride),
        padding=((padding, padding), (padding, padding)),
        dimension_numbers=("NCHW", "OIHW", "NCHW"))
    y = y + b.reshape(1, -1, 1, 1)
    if batch_norm:
        mean = y.mean(axis=(2, 3), keepdims=True)
        var = ((y - mean) ** 2).mean(axis=(2, 3), keepdims=True)
        y = (y - mean) / jnp.sqrt(var + 1e-5)
    if activation == "relu":
        y = jnp.maximum(y, 0.0)
    elif activation == "lrelu":
        y = jnp.where(y >= 0.0, y, 0.2 * y)
    elif activation == "tanh":
        y = jnp.tanh(y)
    return y


# ------------------------------ main -----------------------------------------
if __name__ == "__main__":
    key = jax.random.PRNGKey(0)
    k_x, k_w, k_b = jax.random.split(key, 3)

    # ConvBlock(input_size=4, output_size=8), small NCHW input.
    N, Cin, H, W = 2, 4, 16, 16
    Cout, K = 8, 3

    x = jax.random.normal(k_x, (N, Cin, H, W), dtype=jnp.float32)
    fan_in = Cin * K * K
    bound = 1.0 / (fan_in ** 0.5)
    weight = jax.random.uniform(k_w, (Cout, Cin, K, K), jnp.float32, -bound, bound)
    bias = jax.random.uniform(k_b, (Cout,), jnp.float32, -bound, bound)

    ref = _ref_conv_block(x, weight, bias, activation="relu", batch_norm=True)

    # 1) Exact (f32 matmul) path.
    out_f32 = jax.block_until_ready(
        conv_block(x, weight, bias, activation="relu", batch_norm=True,
                   compute_dtype=jnp.float32))
    assert out_f32.shape == (N, Cout, 8, 8), out_f32.shape
    assert jnp.allclose(out_f32, ref, atol=1e-3, rtol=1e-3), \
        float(jnp.max(jnp.abs(out_f32 - ref)))

    # 2) Default fast path: bf16 matmul operands, f32 accumulation (looser tolerance).
    out_bf16 = jax.block_until_ready(
        conv_block(x, weight, bias, activation="relu", batch_norm=True))
    assert out_bf16.shape == (N, Cout, 8, 8), out_bf16.shape
    assert jnp.allclose(out_bf16, ref, atol=1e-1, rtol=1e-1), \
        float(jnp.max(jnp.abs(out_bf16 - ref)))

    # 3) No-norm path exercises the bias add + leaky-relu branch.
    out_nb = jax.block_until_ready(
        conv_block(x, weight, bias, activation="lrelu", batch_norm=False,
                   compute_dtype=jnp.float32))
    ref_nb = _ref_conv_block(x, weight, bias, activation="lrelu", batch_norm=False)
    assert jnp.allclose(out_nb, ref_nb, atol=1e-3, rtol=1e-3), \
        float(jnp.max(jnp.abs(out_nb - ref_nb)))

    print("KERNEL_OK")
</pallas_src>

<mosaic_0001>
module attributes {stable_mosaic.version = 11 : i64} {
  func.func @kernel(%arg0: i32, %arg1: memref<2x9x2x9x8xf32, #tpu.memory_space<vmem>>, %arg2: memref<36x128xf32, #tpu.memory_space<vmem>>, %arg3: memref<2x64x128xf32, #tpu.memory_space<vmem>>) attributes {dimension_semantics = [#tpu.dimension_semantics<parallel>], iteration_bounds = array<i64: 1>, scalar_prefetch = 0 : i64, scratch_operands = 0 : i64, tpu.core_type = #tpu.core_type<tc>, window_params = [{transform_indices = @transform_0, window_bounds = array<i64: 2, 9, 2, 9, 8>}, {pipeline_mode = #tpu.pipeline_mode<synchronous>, transform_indices = @transform_1, window_bounds = array<i64: 36, 128>}, {transform_indices = @transform_2, window_bounds = array<i64: 2, 64, 128>}]} {
    %c0 = arith.constant 0 : index
    %c0_0 = arith.constant 0 : index
    %c0_1 = arith.constant 0 : index
    %c0_2 = arith.constant 0 : index
    %c0_3 = arith.constant 0 : index
    %0 = vector.load %arg1[%c0, %c0_0, %c0_1, %c0_2, %c0_3] : memref<2x9x2x9x8xf32, #tpu.memory_space<vmem>>, vector<2x9x2x9x8xf32>
    %1 = vector.extract_strided_slice %0 {offsets = [0, 0, 0, 0, 0], sizes = [2, 8, 1, 8, 4], strides = [1, 1, 1, 1, 1]} : vector<2x9x2x9x8xf32> to vector<2x8x1x8x4xf32>
    %2 = vector.shape_cast %1 : vector<2x8x1x8x4xf32> to vector<2x8x8x4xf32>
    %3 = vector.extract_strided_slice %0 {offsets = [0, 0, 0, 0, 4], sizes = [2, 8, 1, 8, 4], strides = [1, 1, 1, 1, 1]} : vector<2x9x2x9x8xf32> to vector<2x8x1x8x4xf32>
    %4 = vector.shape_cast %3 : vector<2x8x1x8x4xf32> to vector<2x8x8x4xf32>
    %5 = vector.extract_strided_slice %0 {offsets = [0, 0, 0, 1, 0], sizes = [2, 8, 1, 8, 4], strides = [1, 1, 1, 1, 1]} : vector<2x9x2x9x8xf32> to vector<2x8x1x8x4xf32>
    %6 = vector.shape_cast %5 : vector<2x8x1x8x4xf32> to vector<2x8x8x4xf32>
    %7 = vector.extract_strided_slice %0 {offsets = [0, 0, 1, 0, 0], sizes = [2, 8, 1, 8, 4], strides = [1, 1, 1, 1, 1]} : vector<2x9x2x9x8xf32> to vector<2x8x1x8x4xf32>
    %8 = vector.shape_cast %7 : vector<2x8x1x8x4xf32> to vector<2x8x8x4xf32>
    %9 = vector.extract_strided_slice %0 {offsets = [0, 0, 1, 0, 4], sizes = [2, 8, 1, 8, 4], strides = [1, 1, 1, 1, 1]} : vector<2x9x2x9x8xf32> to vector<2x8x1x8x4xf32>
    %10 = vector.shape_cast %9 : vector<2x8x1x8x4xf32> to vector<2x8x8x4xf32>
    %11 = vector.extract_strided_slice %0 {offsets = [0, 0, 1, 1, 0], sizes = [2, 8, 1, 8, 4], strides = [1, 1, 1, 1, 1]} : vector<2x9x2x9x8xf32> to vector<2x8x1x8x4xf32>
    %12 = vector.shape_cast %11 : vector<2x8x1x8x4xf32> to vector<2x8x8x4xf32>
    %13 = vector.extract_strided_slice %0 {offsets = [0, 1, 0, 0, 0], sizes = [2, 8, 1, 8, 4], strides = [1, 1, 1, 1, 1]} : vector<2x9x2x9x8xf32> to vector<2x8x1x8x4xf32>
    %14 = vector.shape_cast %13 : vector<2x8x1x8x4xf32> to vector<2x8x8x4xf32>
    %15 = vector.extract_strided_slice %0 {offsets = [0, 1, 0, 0, 4], sizes = [2, 8, 1, 8, 4], strides = [1, 1, 1, 1, 1]} : vector<2x9x2x9x8xf32> to vector<2x8x1x8x4xf32>
    %16 = vector.shape_cast %15 : vector<2x8x1x8x4xf32> to vector<2x8x8x4xf32>
    %17 = vector.extract_strided_slice %0 {offsets = [0, 1, 0, 1, 0], sizes = [2, 8, 1, 8, 4], strides = [1, 1, 1, 1, 1]} : vector<2x9x2x9x8xf32> to vector<2x8x1x8x4xf32>
    %18 = vector.shape_cast %17 : vector<2x8x1x8x4xf32> to vector<2x8x8x4xf32>
    %19 = tpu.concatenate %2, %4, %6, %8, %10, %12, %14, %16, %18 in 3 : vector<2x8x8x4xf32>, vector<2x8x8x4xf32>, vector<2x8x8x4xf32>, vector<2x8x8x4xf32>, vector<2x8x8x4xf32>, vector<2x8x8x4xf32>, vector<2x8x8x4xf32>, vector<2x8x8x4xf32>, vector<2x8x8x4xf32> -> vector<2x8x8x36xf32>
    %20 = vector.shape_cast %19 : vector<2x8x8x36xf32> to vector<128x36xf32>
    %c0_4 = arith.constant 0 : index
    %c0_5 = arith.constant 0 : index
    %21 = vector.load %arg2[%c0_4, %c0_5] : memref<36x128xf32, #tpu.memory_space<vmem>>, vector<36x128xf32>
    %cst = arith.constant dense<0.000000e+00> : vector<128x128xf32>
    %22 = tpu.matmul %20, %21, %cst {dimension_numbers = #tpu.dot_dimension_numbers<[1], [0], [0], [1], [0, 0, 1, 1], [], []>} : vector<128x36xf32>, vector<36x128xf32>, vector<128x128xf32> -> vector<128x128xf32>
    %23 = vector.extract_strided_slice %22 {offsets = [0, 0], sizes = [64, 128], strides = [1, 1]} : vector<128x128xf32> to vector<64x128xf32>
    %cst_6 = arith.constant dense<0.000000e+00> : vector<128xf32>
    %24 = vector.multi_reduction <add>, %23, %cst_6 [0] : vector<64x128xf32> to vector<128xf32>
    %25 = vector.shape_cast %24 : vector<128xf32> to vector<1x128xf32>
    %26 = arith.mulf %23, %23 : vector<64x128xf32>
    %cst_7 = arith.constant dense<0.000000e+00> : vector<128xf32>
    %27 = vector.multi_reduction <add>, %26, %cst_7 [0] : vector<64x128xf32> to vector<128xf32>
    %28 = vector.shape_cast %27 : vector<128xf32> to vector<1x128xf32>
    %cst_8 = arith.constant 1.562500e-02 : f32
    %29 = vector.broadcast %cst_8 : f32 to vector<1x128xf32>
    %30 = arith.mulf %25, %29 : vector<1x128xf32>
    %cst_9 = arith.constant 1.562500e-02 : f32
    %31 = vector.broadcast %cst_9 : f32 to vector<1x128xf32>
    %32 = arith.mulf %28, %31 : vector<1x128xf32>
    %33 = arith.mulf %30, %30 : vector<1x128xf32>
    %34 = arith.subf %32, %33 : vector<1x128xf32>
    %cst_10 = arith.constant 0.000000e+00 : f32
    %35 = vector.broadcast %cst_10 : f32 to vector<1x128xf32>
    %36 = arith.maximumf %34, %35 : vector<1x128xf32>
    %37 = vector.broadcast %30 : vector<1x128xf32> to vector<64x128xf32>
    %38 = arith.subf %23, %37 : vector<64x128xf32>
    %cst_11 = arith.constant 9.99999974E-6 : f32
    %39 = vector.broadcast %cst_11 : f32 to vector<1x128xf32>
    %40 = arith.addf %36, %39 : vector<1x128xf32>
    %41 = math.rsqrt %40 : vector<1x128xf32>
    %42 = vector.broadcast %41 : vector<1x128xf32> to vector<64x128xf32>
    %43 = arith.mulf %38, %42 : vector<64x128xf32>
    %cst_12 = arith.constant 0.000000e+00 : f32
    %44 = vector.broadcast %cst_12 : f32 to vector<64x128xf32>
    %45 = arith.maximumf %43, %44 : vector<64x128xf32>
    %c0_13 = arith.constant 0 : index
    %c0_14 = arith.constant 0 : index
    %c0_15 = arith.constant 0 : index
    %46 = vector.load %arg3[%c0_13, %c0_14, %c0_15] : memref<2x64x128xf32, #tpu.memory_space<vmem>>, vector<1x64x128xf32>
    %47 = vector.shape_cast %46 : vector<1x64x128xf32> to vector<64x128xf32>
    %48 = vector.shape_cast %45 : vector<64x128xf32> to vector<1x64x128xf32>
    tpu.vector_store %arg3[%c0_13, %c0_14, %c0_15], %48 {strides = array<i32>} : memref<2x64x128xf32, #tpu.memory_space<vmem>>, vector<1x64x128xf32>,
    %49 = vector.extract_strided_slice %22 {offsets = [64, 0], sizes = [64, 128], strides = [1, 1]} : vector<128x128xf32> to vector<64x128xf32>
    %cst_16 = arith.constant dense<0.000000e+00> : vector<128xf32>
    %50 = vector.multi_reduction <add>, %49, %cst_16 [0] : vector<64x128xf32> to vector<128xf32>
    %51 = vector.shape_cast %50 : vector<128xf32> to vector<1x128xf32>
    %52 = arith.mulf %49, %49 : vector<64x128xf32>
    %cst_17 = arith.constant dense<0.000000e+00> : vector<128xf32>
    %53 = vector.multi_reduction <add>, %52, %cst_17 [0] : vector<64x128xf32> to vector<128xf32>
    %54 = vector.shape_cast %53 : vector<128xf32> to vector<1x128xf32>
    %cst_18 = arith.constant 1.562500e-02 : f32
    %55 = vector.broadcast %cst_18 : f32 to vector<1x128xf32>
    %56 = arith.mulf %51, %55 : vector<1x128xf32>
    %cst_19 = arith.constant 1.562500e-02 : f32
    %57 = vector.broadcast %cst_19 : f32 to vector<1x128xf32>
    %58 = arith.mulf %54, %57 : vector<1x128xf32>
    %59 = arith.mulf %56, %56 : vector<1x128xf32>
    %60 = arith.subf %58, %59 : vector<1x128xf32>
    %cst_20 = arith.constant 0.000000e+00 : f32
    %61 = vector.broadcast %cst_20 : f32 to vector<1x128xf32>
    %62 = arith.maximumf %60, %61 : vector<1x128xf32>
    %63 = vector.broadcast %56 : vector<1x128xf32> to vector<64x128xf32>
    %64 = arith.subf %49, %63 : vector<64x128xf32>
    %cst_21 = arith.constant 9.99999974E-6 : f32
    %65 = vector.broadcast %cst_21 : f32 to vector<1x128xf32>
    %66 = arith.addf %62, %65 : vector<1x128xf32>
    %67 = math.rsqrt %66 : vector<1x128xf32>
    %68 = vector.broadcast %67 : vector<1x128xf32> to vector<64x128xf32>
    %69 = arith.mulf %64, %68 : vector<64x128xf32>
    %cst_22 = arith.constant 0.000000e+00 : f32
    %70 = vector.broadcast %cst_22 : f32 to vector<64x128xf32>
    %71 = arith.maximumf %69, %70 : vector<64x128xf32>
    %c1 = arith.constant 1 : index
    %c0_23 = arith.constant 0 : index
    %c0_24 = arith.constant 0 : index
    %72 = vector.load %arg3[%c1, %c0_23, %c0_24] : memref<2x64x128xf32, #tpu.memory_space<vmem>>, vector<1x64x128xf32>
    %73 = vector.shape_cast %72 : vector<1x64x128xf32> to vector<64x128xf32>
    %74 = vector.shape_cast %71 : vector<64x128xf32> to vector<1x64x128xf32>
    tpu.vector_store %arg3[%c1, %c0_23, %c0_24], %74 {strides = array<i32>} : memref<2x64x128xf32, #tpu.memory_space<vmem>>, vector<1x64x128xf32>,
    return
  }
  func.func @transform_0(%arg0: i32) -> (i32, i32, i32, i32, i32) {
    %c0_i32 = arith.constant 0 : i32
    %c0_i32_0 = arith.constant 0 : i32
    %c0_i32_1 = arith.constant 0 : i32
    %c0_i32_2 = arith.constant 0 : i32
    %c0_i32_3 = arith.constant 0 : i32
    return %arg0, %c0_i32, %c0_i32_0, %c0_i32_1, %c0_i32_2 : i32, i32, i32, i32, i32
  }
  func.func @transform_1(%arg0: i32) -> (i32, i32) {
    %c0_i32 = arith.constant 0 : i32
    %c0_i32_0 = arith.constant 0 : i32
    %c0_i32_1 = arith.constant 0 : i32
    return %c0_i32, %c0_i32_0 : i32, i32
  }
  func.func @transform_2(%arg0: i32) -> (i32, i32, i32) {
    %c0_i32 = arith.constant 0 : i32
    %c0_i32_0 = arith.constant 0 : i32
    %c0_i32_1 = arith.constant 0 : i32
    return %arg0, %c0_i32, %c0_i32_0 : i32, i32, i32
  }
}

</mosaic_0001>

<llo_original>
// kernel: tpu_custom_call.1
$region0: #{tpu_custom_call.1}
  #allocation0 [shape = 'u32[]', space=smem, size = 0x4, offset = 0x4, fixed_abs, tag = 'smem constant byte address 0x4 - core index']
  #allocation1 [shape = 'u32[144,128]{1,0:T(1,128)}', space=vmem, size = 0x12000, scoped, tag = 'internal scratch']
  %s0 = inlined_call_operand.vmem [shape: f32[2,9,2,9,8], index: 0, kind: input, shape index: {}]
  %s1 = inlined_call_operand.vmem [shape: f32[36,128], index: 1, kind: input, shape index: {}]
  %s2 = inlined_call_operand.hbm [shape: f32[2,64,128], index: 2, kind: output, shape index: {}]
  %s3 = sld [smem:[#allocation0]]
  $region18: #{tpu_custom_call.1} parent=0
    _
  %s5 = ssub.s32 1, %s3
  %s6 = scalar_select 0, %s5, %s3
  $region1: #{tpu_custom_call.1} parent=0
    #allocation2 [shape = 'u8[65536]{0}', space=vmem, size = 0x10000, scoped, tag = 'output window, operand 0, single buffered']
    #allocation3 [shape = 's32[1]{0}', space=sflag, size = 0x4, scoped, tag = 'scoped memory for tpu_custom_call.1']
    %7 = vsyncpa [#allocation3], 0
    // Predicated region
    $region2: #{tpu_custom_call.1} parent=1 // pred_check
      _
    $region3: #{tpu_custom_call.1} parent=1 // pred_check_branch
      %9 = sbr.rel (0) target = $region5
    $region4: #{tpu_custom_call.1} parent=1 // pred_region
      _
    $region5: #{tpu_custom_call.1} parent=1 // pred_fallthru
      _
    // Predicated region
    $region6: #{tpu_custom_call.1} parent=1 // pred_check
      _
    $region7: #{tpu_custom_call.1} parent=1 // pred_check_branch
      %11 = sbr.rel (0) target = $region9
    $region8: #{tpu_custom_call.1} parent=1 // pred_region
      _
    $region9: #{tpu_custom_call.1} parent=1 // pred_fallthru
      _
    %v12 = vld [vmem:[%s0] sm:$0xff]
    %v13 = vld [vmem:[%s0 + $0x8] sm:$0x1]
    %v14 = vld [vmem:[%s0 + $0x10] sm:$0xff]
    %v15 = vld [vmem:[%s0 + $0x18] sm:$0x1]
    %v16 = vld [vmem:[%s0 + $0x20] sm:$0xff]
    %v17 = vld [vmem:[%s0 + $0x28] sm:$0x1]
    %v18 = vld [vmem:[%s0 + $0x30] sm:$0xff]
    %v19 = vld [vmem:[%s0 + $0x38] sm:$0x1]
    %v20 = vld [vmem:[%s0 + $0x40] sm:$0xff]
    %v21 = vld [vmem:[%s0 + $0x48] sm:$0x1]
    %v22 = vld [vmem:[%s0 + $0x50] sm:$0xff]
    %v23 = vld [vmem:[%s0 + $0x58] sm:$0x1]
    %v24 = vld [vmem:[%s0 + $0x60] sm:$0xff]
    %v25 = vld [vmem:[%s0 + $0x68] sm:$0x1]
    %v26 = vld [vmem:[%s0 + $0x70] sm:$0xff]
    %v27 = vld [vmem:[%s0 + $0x78] sm:$0x1]
    %v28 = vld [vmem:[%s0 + $0x80] sm:$0xff]
    %v29 = vld [vmem:[%s0 + $0x88] sm:$0x1]
    %v30 = vld [vmem:[%s0 + $0x90] sm:$0xff]
    %v31 = vld [vmem:[%s0 + $0x98] sm:$0x1]
    %v32 = vld [vmem:[%s0 + $0xa0] sm:$0xff]
    %v33 = vld [vmem:[%s0 + $0xa8] sm:$0x1]
    %v34 = vld [vmem:[%s0 + $0xb0] sm:$0xff]
    %v35 = vld [vmem:[%s0 + $0xb8] sm:$0x1]
    %v36 = vld [vmem:[%s0 + $0xc0] sm:$0xff]
    %v37 = vld [vmem:[%s0 + $0xc8] sm:$0x1]
    %v38 = vld [vmem:[%s0 + $0xd0] sm:$0xff]
    %v39 = vld [vmem:[%s0 + $0xd8] sm:$0x1]
    %v40 = vld [vmem:[%s0 + $0xe0] sm:$0xff]
    %v41 = vld [vmem:[%s0 + $0xe8] sm:$0x1]
    %v42 = vld [vmem:[%s0 + $0xf0] sm:$0xff]
    %v43 = vld [vmem:[%s0 + $0xf8] sm:$0x1]
    %v44 = vld [vmem:[%s0 + $0x100] sm:$0xff]
    %v45 = vld [vmem:[%s0 + $0x108] sm:$0x1]
    %v46 = vld [vmem:[%s0 + $0x120] sm:$0xff]
    %v47 = vld [vmem:[%s0 + $0x128] sm:$0x1]
    %v48 = vld [vmem:[%s0 + $0x130] sm:$0xff]
    %v49 = vld [vmem:[%s0 + $0x138] sm:$0x1]
    %v50 = vld [vmem:[%s0 + $0x140] sm:$0xff]
    %v51 = vld [vmem:[%s0 + $0x148] sm:$0x1]
    %v52 = vld [vmem:[%s0 + $0x150] sm:$0xff]
    %v53 = vld [vmem:[%s0 + $0x158] sm:$0x1]
    %v54 = vld [vmem:[%s0 + $0x160] sm:$0xff]
    %v55 = vld [vmem:[%s0 + $0x168] sm:$0x1]
    %v56 = vld [vmem:[%s0 + $0x170] sm:$0xff]
    %v57 = vld [vmem:[%s0 + $0x178] sm:$0x1]
    %v58 = vld [vmem:[%s0 + $0x180] sm:$0xff]
    %v59 = vld [vmem:[%s0 + $0x188] sm:$0x1]
    %v60 = vld [vmem:[%s0 + $0x190] sm:$0xff]
    %v61 = vld [vmem:[%s0 + $0x198] sm:$0x1]
    %v62 = vld [vmem:[%s0 + $0x1a0] sm:$0xff]
    %v63 = vld [vmem:[%s0 + $0x1a8] sm:$0x1]
    %v64 = vld [vmem:[%s0 + $0x1b0] sm:$0xff]
    %v65 = vld [vmem:[%s0 + $0x1b8] sm:$0x1]
    %v66 = vld [vmem:[%s0 + $0x1c0] sm:$0xff]
    %v67 = vld [vmem:[%s0 + $0x1c8] sm:$0x1]
    %v68 = vld [vmem:[%s0 + $0x1d0] sm:$0xff]
    %v69 = vld [vmem:[%s0 + $0x1d8] sm:$0x1]
    %v70 = vld [vmem:[%s0 + $0x1e0] sm:$0xff]
    %v71 = vld [vmem:[%s0 + $0x1e8] sm:$0x1]
    %v72 = vld [vmem:[%s0 + $0x1f0] sm:$0xff]
    %v73 = vld [vmem:[%s0 + $0x1f8] sm:$0x1]
    %v74 = vld [vmem:[%s0 + $0x200] sm:$0xff]
    %v75 = vld [vmem:[%s0 + $0x208] sm:$0x1]
    %v76 = vld [vmem:[%s0 + $0x210] sm:$0xff]
    %v77 = vld [vmem:[%s0 + $0x218] sm:$0x1]
    %v78 = vld [vmem:[%s0 + $0x220] sm:$0xff]
    %v79 = vld [vmem:[%s0 + $0x228] sm:$0x1]
    %vm112 = vcmask 1046528
    %v113 = vrot.slane %v12, 1
    %v114 = vrot.slane %v13, 1
    %v115 = vsel %vm112, %v113, %v114
    %v116 = vrot.slane %v16, 1
    %v117 = vrot.slane %v17, 1
    %v118 = vsel %vm112, %v116, %v117
    %v119 = vrot.slane %v20, 1
    %v120 = vrot.slane %v21, 1
    %v121 = vsel %vm112, %v119, %v120
    %v122 = vrot.slane %v24, 1
    %v123 = vrot.slane %v25, 1
    %v124 = vsel %vm112, %v122, %v123
    %v125 = vrot.slane %v28, 1
    %v126 = vrot.slane %v29, 1
    %v127 = vsel %vm112, %v125, %v126
    %v128 = vrot.slane %v32, 1
    %v129 = vrot.slane %v33, 1
    %v130 = vsel %vm112, %v128, %v129
    %v131 = vrot.slane %v36, 1
    %v132 = vrot.slane %v37, 1
    %v133 = vsel %vm112, %v131, %v132
    %v134 = vrot.slane %v40, 1
    %v135 = vrot.slane %v41, 1
    %v136 = vsel %vm112, %v134, %v135
    %v137 = vrot.slane %v46, 1
    %v138 = vrot.slane %v47, 1
    %v139 = vsel %vm112, %v137, %v138
    %v140 = vrot.slane %v50, 1
    %v141 = vrot.slane %v51, 1
    %v142 = vsel %vm112, %v140, %v141
    %v143 = vrot.slane %v54, 1
    %v144 = vrot.slane %v55, 1
    %v145 = vsel %vm112, %v143, %v144
    %v146 = vrot.slane %v58, 1
    %v147 = vrot.slane %v59, 1
    %v148 = vsel %vm112, %v146, %v147
    %v149 = vrot.slane %v62, 1
    %v150 = vrot.slane %v63, 1
    %v151 = vsel %vm112, %v149, %v150
    %v152 = vrot.slane %v66, 1
    %v153 = vrot.slane %v67, 1
    %v154 = vsel %vm112, %v152, %v153
    %v155 = vrot.slane %v70, 1
    %v156 = vrot.slane %v71, 1
    %v157 = vsel %vm112, %v155, %v156
    %v158 = vrot.slane %v74, 1
    %v159 = vrot.slane %v75, 1
    %v160 = vsel %vm112, %v158, %v159
    %161 = vrot.lane.b32.xlu0 %v115, 8
    %v162 = vpop.permute.xlu0 %161
    %163 = vrot.lane.b32.xlu0 %v118, 8
    %v164 = vpop.permute.xlu0 %163
    %165 = vrot.lane.b32.xlu0 %v121, 8
    %v166 = vpop.permute.xlu0 %165
    %167 = vrot.lane.b32.xlu0 %v124, 8
    %v168 = vpop.permute.xlu0 %167
    %169 = vrot.lane.b32.xlu0 %v127, 8
    %v170 = vpop.permute.xlu0 %169
    %171 = vrot.lane.b32.xlu0 %v130, 8
    %v172 = vpop.permute.xlu0 %171
    %173 = vrot.lane.b32.xlu0 %v133, 8
    %v174 = vpop.permute.xlu0 %173
    %175 = vrot.lane.b32.xlu0 %v136, 8
    %v176 = vpop.permute.xlu0 %175
    %177 = vrot.lane.b32.xlu0 %v139, 8
    %v178 = vpop.permute.xlu0 %177
    %179 = vrot.lane.b32.xlu0 %v142, 8
    %v180 = vpop.permute.xlu0 %179
    %181 = vrot.lane.b32.xlu0 %v145, 8
    %v182 = vpop.permute.xlu0 %181
    %183 = vrot.lane.b32.xlu0 %v148, 8
    %v184 = vpop.permute.xlu0 %183
    %185 = vrot.lane.b32.xlu0 %v151, 8
    %v186 = vpop.permute.xlu0 %185
    %187 = vrot.lane.b32.xlu0 %v154, 8
    %v188 = vpop.permute.xlu0 %187
    %189 = vrot.lane.b32.xlu0 %v157, 8
    %v190 = vpop.permute.xlu0 %189
    %191 = vrot.lane.b32.xlu0 %v160, 8
    %v192 = vpop.permute.xlu0 %191
    %225 = vrot.lane.b32.xlu0 %v14, 12
    %v226 = vpop.permute.xlu0 %225
    %227 = vrot.lane.b32.xlu0 %v18, 12
    %v228 = vpop.permute.xlu0 %227
    %229 = vrot.lane.b32.xlu0 %v22, 12
    %v230 = vpop.permute.xlu0 %229
    %231 = vrot.lane.b32.xlu0 %v26, 12
    %v232 = vpop.permute.xlu0 %231
    %233 = vrot.lane.b32.xlu0 %v30, 12
    %v234 = vpop.permute.xlu0 %233
    %235 = vrot.lane.b32.xlu0 %v34, 12
    %v236 = vpop.permute.xlu0 %235
    %237 = vrot.lane.b32.xlu0 %v38, 12
    %v238 = vpop.permute.xlu0 %237
    %239 = vrot.lane.b32.xlu0 %v42, 12
    %v240 = vpop.permute.xlu0 %239
    %241 = vrot.lane.b32.xlu0 %v48, 12
    %v242 = vpop.permute.xlu0 %241
    %243 = vrot.lane.b32.xlu0 %v52, 12
    %v244 = vpop.permute.xlu0 %243
    %245 = vrot.lane.b32.xlu0 %v56, 12
    %v246 = vpop.permute.xlu0 %245
    %247 = vrot.lane.b32.xlu0 %v60, 12
    %v248 = vpop.permute.xlu0 %247
    %249 = vrot.lane.b32.xlu0 %v64, 12
    %v250 = vpop.permute.xlu0 %249
    %251 = vrot.lane.b32.xlu0 %v68, 12
    %v252 = vpop.permute.xlu0 %251
    %253 = vrot.lane.b32.xlu0 %v72, 12
    %v254 = vpop.permute.xlu0 %253
    %255 = vrot.lane.b32.xlu0 %v76, 12
    %v256 = vpop.permute.xlu0 %255
    %v289 = vrot.slane %v14, 1
    %v290 = vrot.slane %v15, 1
    %v291 = vsel %vm112, %v289, %v290
    %v292 = vrot.slane %v18, 1
    %v293 = vrot.slane %v19, 1
    %v294 = vsel %vm112, %v292, %v293
    %v295 = vrot.slane %v22, 1
    %v296 = vrot.slane %v23, 1
    %v297 = vsel %vm112, %v295, %v296
    %v298 = vrot.slane %v26, 1
    %v299 = vrot.slane %v27, 1
    %v300 = vsel %vm112, %v298, %v299
    %v301 = vrot.slane %v30, 1
    %v302 = vrot.slane %v31, 1
    %v303 = vsel %vm112, %v301, %v302
    %v304 = vrot.slane %v34, 1
    %v305 = vrot.slane %v35, 1
    %v306 = vsel %vm112, %v304, %v305
    %v307 = vrot.slane %v38, 1
    %v308 = vrot.slane %v39, 1
    %v309 = vsel %vm112, %v307, %v308
    %v310 = vrot.slane %v42, 1
    %v311 = vrot.slane %v43, 1
    %v312 = vsel %vm112, %v310, %v311
    %v313 = vrot.slane %v48, 1
    %v314 = vrot.slane %v49, 1
    %v315 = vsel %vm112, %v313, %v314
    %v316 = vrot.slane %v52, 1
    %v317 = vrot.slane %v53, 1
    %v318 = vsel %vm112, %v316, %v317
    %v319 = vrot.slane %v56, 1
    %v320 = vrot.slane %v57, 1
    %v321 = vsel %vm112, %v319, %v320
    %v322 = vrot.slane %v60, 1
    %v323 = vrot.slane %v61, 1
    %v324 = vsel %vm112, %v322, %v323
    %v325 = vrot.slane %v64, 1
    %v326 = vrot.slane %v65, 1
    %v327 = vsel %vm112, %v325, %v326
    %v328 = vrot.slane %v68, 1
    %v329 = vrot.slane %v69, 1
    %v330 = vsel %vm112, %v328, %v329
    %v331 = vrot.slane %v72, 1
    %v332 = vrot.slane %v73, 1
    %v333 = vsel %vm112, %v331, %v332
    %v334 = vrot.slane %v76, 1
    %v335 = vrot.slane %v77, 1
    %v336 = vsel %vm112, %v334, %v335
    %337 = vrot.lane.b32.xlu0 %v291, 20
    %v338 = vpop.permute.xlu0 %337
    %339 = vrot.lane.b32.xlu0 %v294, 20
    %v340 = vpop.permute.xlu0 %339
    %341 = vrot.lane.b32.xlu0 %v297, 20
    %v342 = vpop.permute.xlu0 %341
    %343 = vrot.lane.b32.xlu0 %v300, 20
    %v344 = vpop.permute.xlu0 %343
    %345 = vrot.lane.b32.xlu0 %v303, 20
    %v346 = vpop.permute.xlu0 %345
    %347 = vrot.lane.b32.xlu0 %v306, 20
    %v348 = vpop.permute.xlu0 %347
    %349 = vrot.lane.b32.xlu0 %v309, 20
    %v350 = vpop.permute.xlu0 %349
    %351 = vrot.lane.b32.xlu0 %v312, 20
    %v352 = vpop.permute.xlu0 %351
    %353 = vrot.lane.b32.xlu0 %v315, 20
    %v354 = vpop.permute.xlu0 %353
    %355 = vrot.lane.b32.xlu0 %v318, 20
    %v356 = vpop.permute.xlu0 %355
    %357 = vrot.lane.b32.xlu0 %v321, 20
    %v358 = vpop.permute.xlu0 %357
    %359 = vrot.lane.b32.xlu0 %v324, 20
    %v360 = vpop.permute.xlu0 %359
    %361 = vrot.lane.b32.xlu0 %v327, 20
    %v362 = vpop.permute.xlu0 %361
    %363 = vrot.lane.b32.xlu0 %v330, 20
    %v364 = vpop.permute.xlu0 %363
    %365 = vrot.lane.b32.xlu0 %v333, 20
    %v366 = vpop.permute.xlu0 %365
    %367 = vrot.lane.b32.xlu0 %v336, 20
    %v368 = vpop.permute.xlu0 %367
    %387 = vrot.lane.b32.xlu0 %v16, 24
    %v388 = vpop.permute.xlu0 %387
    %389 = vrot.lane.b32.xlu0 %v20, 24
    %v390 = vpop.permute.xlu0 %389
    %391 = vrot.lane.b32.xlu0 %v24, 24
    %v392 = vpop.permute.xlu0 %391
    %393 = vrot.lane.b32.xlu0 %v28, 24
    %v394 = vpop.permute.xlu0 %393
    %395 = vrot.lane.b32.xlu0 %v32, 24
    %v396 = vpop.permute.xlu0 %395
    %397 = vrot.lane.b32.xlu0 %v36, 24
    %v398 = vpop.permute.xlu0 %397
    %399 = vrot.lane.b32.xlu0 %v40, 24
    %v400 = vpop.permute.xlu0 %399
    %401 = vrot.lane.b32.xlu0 %v44, 24
    %v402 = vpop.permute.xlu0 %401
    %403 = vrot.lane.b32.xlu0 %v50, 24
    %v404 = vpop.permute.xlu0 %403
    %405 = vrot.lane.b32.xlu0 %v54, 24
    %v406 = vpop.permute.xlu0 %405
    %407 = vrot.lane.b32.xlu0 %v58, 24
    %v408 = vpop.permute.xlu0 %407
    %409 = vrot.lane.b32.xlu0 %v62, 24
    %v410 = vpop.permute.xlu0 %409
    %411 = vrot.lane.b32.xlu0 %v66, 24
    %v412 = vpop.permute.xlu0 %411
    %413 = vrot.lane.b32.xlu0 %v70, 24
    %v414 = vpop.permute.xlu0 %413
    %415 = vrot.lane.b32.xlu0 %v74, 24
    %v416 = vpop.permute.xlu0 %415
    %417 = vrot.lane.b32.xlu0 %v78, 24
    %v418 = vpop.permute.xlu0 %417
    %v437 = vrot.slane %v44, 1
    %v438 = vrot.slane %v45, 1
    %v439 = vsel %vm112, %v437, %v438
    %v440 = vrot.slane %v78, 1
    %v441 = vrot.slane %v79, 1
    %v442 = vsel %vm112, %v440, %v441
    %443 = vrot.lane.b32.xlu0 %v118, 32
    %v444 = vpop.permute.xlu0 %443
    %445 = vrot.lane.b32.xlu0 %v121, 32
    %v446 = vpop.permute.xlu0 %445
    %447 = vrot.lane.b32.xlu0 %v124, 32
    %v448 = vpop.permute.xlu0 %447
    %449 = vrot.lane.b32.xlu0 %v127, 32
    %v450 = vpop.permute.xlu0 %449
    %451 = vrot.lane.b32.xlu0 %v130, 32
    %v452 = vpop.permute.xlu0 %451
    %453 = vrot.lane.b32.xlu0 %v133, 32
    %v454 = vpop.permute.xlu0 %453
    %455 = vrot.lane.b32.xlu0 %v136, 32
    %v456 = vpop.permute.xlu0 %455
    %457 = vrot.lane.b32.xlu0 %v439, 32
    %v458 = vpop.permute.xlu0 %457
    %459 = vrot.lane.b32.xlu0 %v142, 32
    %v460 = vpop.permute.xlu0 %459
    %461 = vrot.lane.b32.xlu0 %v145, 32
    %v462 = vpop.permute.xlu0 %461
    %463 = vrot.lane.b32.xlu0 %v148, 32
    %v464 = vpop.permute.xlu0 %463
    %465 = vrot.lane.b32.xlu0 %v151, 32
    %v466 = vpop.permute.xlu0 %465
    %467 = vrot.lane.b32.xlu0 %v154, 32
    %v468 = vpop.permute.xlu0 %467
    %469 = vrot.lane.b32.xlu0 %v157, 32
    %v470 = vpop.permute.xlu0 %469
    %471 = vrot.lane.b32.xlu0 %v160, 32
    %v472 = vpop.permute.xlu0 %471
    %473 = vrot.lane.b32.xlu0 %v442, 32
    %v474 = vpop.permute.xlu0 %473
    %vm491 = vcmask 64512
    %v492 = vsel %vm491, %v12, %v162
    %v493 = vsel %vm491, %v16, %v164
    %v494 = vsel %vm491, %v20, %v166
    %v495 = vsel %vm491, %v24, %v168
    %v496 = vsel %vm491, %v28, %v170
    %v497 = vsel %vm491, %v32, %v172
    %v498 = vsel %vm491, %v36, %v174
    %v499 = vsel %vm491, %v40, %v176
    %v500 = vsel %vm491, %v46, %v178
    %v501 = vsel %vm491, %v50, %v180
    %v502 = vsel %vm491, %v54, %v182
    %v503 = vsel %vm491, %v58, %v184
    %v504 = vsel %vm491, %v62, %v186
    %v505 = vsel %vm491, %v66, %v188
    %v506 = vsel %vm491, %v70, %v190
    %v507 = vsel %vm491, %v74, %v192
    %vm508 = vcmask 97280
    %v509 = vsel %vm508, %v492, %v226
    %v510 = vsel %vm508, %v493, %v228
    %v511 = vsel %vm508, %v494, %v230
    %v512 = vsel %vm508, %v495, %v232
    %v513 = vsel %vm508, %v496, %v234
    %v514 = vsel %vm508, %v497, %v236
    %v515 = vsel %vm508, %v498, %v238
    %v516 = vsel %vm508, %v499, %v240
    %v517 = vsel %vm508, %v500, %v242
    %v518 = vsel %vm508, %v501, %v244
    %v519 = vsel %vm508, %v502, %v246
    %v520 = vsel %vm508, %v503, %v248
    %v521 = vsel %vm508, %v504, %v250
    %v522 = vsel %vm508, %v505, %v252
    %v523 = vsel %vm508, %v506, %v254
    %v524 = vsel %vm508, %v507, %v256
    %vm525 = vcmask 130048
    %v526 = vsel %vm525, %v509, %v226
    %v527 = vsel %vm525, %v510, %v228
    %v528 = vsel %vm525, %v511, %v230
    %v529 = vsel %vm525, %v512, %v232
    %v530 = vsel %vm525, %v513, %v234
    %v531 = vsel %vm525, %v514, %v236
    %v532 = vsel %vm525, %v515, %v238
    %v533 = vsel %vm525, %v516, %v240
    %v534 = vsel %vm525, %v517, %v242
    %v535 = vsel %vm525, %v518, %v244
    %v536 = vsel %vm525, %v519, %v246
    %v537 = vsel %vm525, %v520, %v248
    %v538 = vsel %vm525, %v521, %v250
    %v539 = vsel %vm525, %v522, %v252
    %v540 = vsel %vm525, %v523, %v254
    %v541 = vsel %vm525, %v524, %v256
    %vm542 = vcmask 162816
    %v543 = vsel %vm542, %v526, %v338
    %v544 = vsel %vm542, %v527, %v340
    %v545 = vsel %vm542, %v528, %v342
    %v546 = vsel %vm542, %v529, %v344
    %v547 = vsel %vm542, %v530, %v346
    %v548 = vsel %vm542, %v531, %v348
    %v549 = vsel %vm542, %v532, %v350
    %v550 = vsel %vm542, %v533, %v352
    %v551 = vsel %vm542, %v534, %v354
    %v552 = vsel %vm542, %v535, %v356
    %v553 = vsel %vm542, %v536, %v358
    %v554 = vsel %vm542, %v537, %v360
    %v555 = vsel %vm542, %v538, %v362
    %v556 = vsel %vm542, %v539, %v364
    %v557 = vsel %vm542, %v540, %v366
    %v558 = vsel %vm542, %v541, %v368
    %vm559 = vcmask 195584
    %v560 = vsel %vm559, %v543, %v388
    %v561 = vsel %vm559, %v544, %v390
    %v562 = vsel %vm559, %v545, %v392
    %v563 = vsel %vm559, %v546, %v394
    %v564 = vsel %vm559, %v547, %v396
    %v565 = vsel %vm559, %v548, %v398
    %v566 = vsel %vm559, %v549, %v400
    %v567 = vsel %vm559, %v550, %v402
    %v568 = vsel %vm559, %v551, %v404
    %v569 = vsel %vm559, %v552, %v406
    %v570 = vsel %vm559, %v553, %v408
    %v571 = vsel %vm559, %v554, %v410
    %v572 = vsel %vm559, %v555, %v412
    %v573 = vsel %vm559, %v556, %v414
    %v574 = vsel %vm559, %v557, %v416
    %v575 = vsel %vm559, %v558, %v418
    %vm576 = vcmask 228352
    %v577 = vsel %vm576, %v560, %v388
    %v578 = vsel %vm576, %v561, %v390
    %v579 = vsel %vm576, %v562, %v392
    %v580 = vsel %vm576, %v563, %v394
    %v581 = vsel %vm576, %v564, %v396
    %v582 = vsel %vm576, %v565, %v398
    %v583 = vsel %vm576, %v566, %v400
    %v584 = vsel %vm576, %v567, %v402
    %v585 = vsel %vm576, %v568, %v404
    %v586 = vsel %vm576, %v569, %v406
    %v587 = vsel %vm576, %v570, %v408
    %v588 = vsel %vm576, %v571, %v410
    %v589 = vsel %vm576, %v572, %v412
    %v590 = vsel %vm576, %v573, %v414
    %v591 = vsel %vm576, %v574, %v416
    %v592 = vsel %vm576, %v575, %v418
    %vm593 = vcmask 261120
    %v594 = vsel %vm593, %v577, %v444
    %v595 = vsel %vm593, %v578, %v446
    %v596 = vsel %vm593, %v579, %v448
    %v597 = vsel %vm593, %v580, %v450
    %v598 = vsel %vm593, %v581, %v452
    %v599 = vsel %vm593, %v582, %v454
    %v600 = vsel %vm593, %v583, %v456
    %v601 = vsel %vm593, %v584, %v458
    %v602 = vsel %vm593, %v585, %v460
    %v603 = vsel %vm593, %v586, %v462
    %v604 = vsel %vm593, %v587, %v464
    %v605 = vsel %vm593, %v588, %v466
    %v606 = vsel %vm593, %v589, %v468
    %v607 = vsel %vm593, %v590, %v470
    %v608 = vsel %vm593, %v591, %v472
    %v609 = vsel %vm593, %v592, %v474
    %v610 = vld [vmem:[%s1] sm:$0xff]
    %v611 = vld [vmem:[%s1 + $0x8] sm:$0xff]
    %v612 = vld [vmem:[%s1 + $0x10] sm:$0xff]
    %v613 = vld [vmem:[%s1 + $0x18] sm:$0xff]
    %v614 = vld [vmem:[%s1 + $0x20] sm:$0xf]
    %vm615 = vcmask 293888
    %v617 = vsel %vm615, %v594, 0
    %v620 = vsel %vm615, %v595, 0
    %v623 = vsel %vm615, %v596, 0
    %v626 = vsel %vm615, %v597, 0
    %v629 = vsel %vm615, %v598, 0
    %v632 = vsel %vm615, %v599, 0
    %v635 = vsel %vm615, %v600, 0
    %v638 = vsel %vm615, %v601, 0
    %v641 = vsel %vm615, %v602, 0
    %v644 = vsel %vm615, %v603, 0
    %v647 = vsel %vm615, %v604, 0
    %v650 = vsel %vm615, %v605, 0
    %v653 = vsel %vm615, %v606, 0
    %v656 = vsel %vm615, %v607, 0
    %v659 = vsel %vm615, %v608, 0
    %v662 = vsel %vm615, %v609, 0
    %vm664 = vcmask 1043456
    %v666 = vsel %vm664, %v614, 0
    %668 = vmatprep.subr.mxu0 0.0
    %669 = vmatpush1.msra.mxu0 %v610
    %670 = vmatprep.subr.mxu0 0.0
    %671 = vmatpush1.msra.mxu0 %v611
    %672 = vmatprep.subr.mxu0 0.0
    %673 = vmatpush1.msra.mxu0 %v612
    %674 = vmatprep.subr.mxu0 0.0
    %675 = vmatpush1.msra.mxu0 %v613
    %676 = vmatprep.subr.mxu0 0.0
    %677 = vmatpush1.msra.mxu0 %v666
    %678 = vmatprep.subr.mxu0 0.0
    %679 = vmatpush1.msra.mxu0 0.0
    %680 = vmatprep.subr.mxu0 0.0
    %681 = vmatpush1.msra.mxu0 0.0
    %682 = vmatprep.subr.mxu0 0.0
    %683 = vmatpush1.msra.mxu0 0.0
    %684 = vmatprep.subr.mxu0 0.0
    %685 = vmatpush1.msra.mxu0 0.0
    %686 = vmatprep.subr.mxu0 0.0
    %687 = vmatpush1.msra.mxu0 0.0
    %688 = vmatprep.subr.mxu0 0.0
    %689 = vmatpush1.msra.mxu0 0.0
    %690 = vmatprep.subr.mxu0 0.0
    %691 = vmatpush1.msra.mxu0 0.0
    %692 = vmatprep.subr.mxu0 0.0
    %693 = vmatpush1.msra.mxu0 0.0
    %694 = vmatprep.subr.mxu0 0.0
    %695 = vmatpush1.msra.mxu0 0.0
    %696 = vmatprep.subr.mxu0 0.0
    %697 = vmatpush1.msra.mxu0 0.0
    %698 = vmatprep.subr.mxu0 0.0
    %699 = vmatpush1.msra.mxu0 0.0
    %700 = vmatprep.subr.mxu0 0.0
    %701 = vmatpush1.msra.mxu0 0.0
    %702 = vmatprep.subr.mxu0 0.0
    %703 = vmatpush1.msra.mxu0 0.0
    %704 = vmatprep.subr.mxu0 0.0
    %705 = vmatpush1.msra.mxu0 0.0
    %706 = vmatprep.subr.mxu0 0.0
    %707 = vmatpush1.msra.mxu0 0.0
    %708 = vmatprep.subr.mxu0 0.0
    %709 = vmatpush1.msra.mxu0 0.0
    %710 = vmatprep.subr.mxu0 0.0
    %711 = vmatpush1.msra.mxu0 0.0
    %712 = vmatprep.subr.mxu0 0.0
    %713 = vmatpush1.msra.mxu0 0.0
    %714 = vmatprep.subr.mxu0 0.0
    %715 = vmatpush1.msra.mxu0 0.0
    %716 = vmatprep.subr.mxu0 0.0
    %717 = vmatpush1.msra.mxu0 0.0
    %718 = vmatprep.subr.mxu0 0.0
    %719 = vmatpush1.msra.mxu0 0.0
    %720 = vmatprep.subr.mxu0 0.0
    %721 = vmatpush1.msra.mxu0 0.0
    %722 = vmatprep.subr.mxu0 0.0
    %723 = vmatpush1.msra.mxu0 0.0
    %724 = vmatprep.subr.mxu0 0.0
    %725 = vmatpush1.msra.mxu0 0.0
    %726 = vmatprep.subr.mxu0 0.0
    %727 = vmatpush1.msra.mxu0 0.0
    %728 = vmatprep.subr.mxu0 0.0
    %729 = vmatpush1.msra.mxu0 0.0
    %730 = vmatprep.subr.mxu0 0.0
    %731 = vmatpush1.msra.mxu0 0.0
    %732 = vmatprep.mubr.f32.mxu0 0.0
    %733 = vmatmul.mubr.f32.gmra.mrb[0].mxu0 %v617
    %v734 = vpop.f32.mrb[0].mxu0
    %v735 = vadd.f32 0.0, %v734
    %v736 = vpop.f32.mrb[0].mxu0
    %737 = vmatprep.mubr.f32.mxu0 0.0
    %738 = vmatmul.mubr.f32.gmra.mrb[0].mxu0 %v620
    %v739 = vpop.f32.mrb[0].mxu0
    %v740 = vadd.f32 0.0, %v739
    %v741 = vpop.f32.mrb[0].mxu0
    %742 = vmatprep.mubr.f32.mxu0 0.0
    %743 = vmatmul.mubr.f32.gmra.mrb[0].mxu0 %v623
    %v744 = vpop.f32.mrb[0].mxu0
    %v745 = vadd.f32 0.0, %v744
    %v746 = vpop.f32.mrb[0].mxu0
    %747 = vmatprep.mubr.f32.mxu0 0.0
    %748 = vmatmul.mubr.f32.gmra.mrb[0].mxu0 %v626
    %v749 = vpop.f32.mrb[0].mxu0
    %v750 = vadd.f32 0.0, %v749
    %v751 = vpop.f32.mrb[0].mxu0
    %752 = vmatprep.mubr.f32.mxu0 0.0
    %753 = vmatmul.mubr.f32.gmra.mrb[0].mxu0 %v629
    %v754 = vpop.f32.mrb[0].mxu0
    %v755 = vadd.f32 0.0, %v754
    %v756 = vpop.f32.mrb[0].mxu0
    %757 = vmatprep.mubr.f32.mxu0 0.0
    %758 = vmatmul.mubr.f32.gmra.mrb[0].mxu0 %v632
    %v759 = vpop.f32.mrb[0].mxu0
    %v760 = vadd.f32 0.0, %v759
    %v761 = vpop.f32.mrb[0].mxu0
    %762 = vmatprep.mubr.f32.mxu0 0.0
    %763 = vmatmul.mubr.f32.gmra.mrb[0].mxu0 %v635
    %v764 = vpop.f32.mrb[0].mxu0
    %v765 = vadd.f32 0.0, %v764
    %v766 = vpop.f32.mrb[0].mxu0
    %767 = vmatprep.mubr.f32.mxu0 0.0
    %768 = vmatmul.mubr.f32.gmra.mrb[0].mxu0 %v638
    %v769 = vpop.f32.mrb[0].mxu0
    %v770 = vadd.f32 0.0, %v769
    %v771 = vpop.f32.mrb[0].mxu0
    %772 = vmatprep.mubr.f32.mxu0 0.0
    %773 = vmatmul.mubr.f32.gmra.mrb[0].mxu0 %v641
    %v774 = vpop.f32.mrb[0].mxu0
    %v775 = vadd.f32 0.0, %v774
    %v776 = vpop.f32.mrb[0].mxu0
    %777 = vmatprep.mubr.f32.mxu0 0.0
    %778 = vmatmul.mubr.f32.gmra.mrb[0].mxu0 %v644
    %v779 = vpop.f32.mrb[0].mxu0
    %v780 = vadd.f32 0.0, %v779
    %v781 = vpop.f32.mrb[0].mxu0
    %782 = vmatprep.mubr.f32.mxu0 0.0
    %783 = vmatmul.mubr.f32.gmra.mrb[0].mxu0 %v647
    %v784 = vpop.f32.mrb[0].mxu0
    %v785 = vadd.f32 0.0, %v784
    %v786 = vpop.f32.mrb[0].mxu0
    %787 = vmatprep.mubr.f32.mxu0 0.0
    %788 = vmatmul.mubr.f32.gmra.mrb[0].mxu0 %v650
    %v789 = vpop.f32.mrb[0].mxu0
    %v790 = vadd.f32 0.0, %v789
    %v791 = vpop.f32.mrb[0].mxu0
    %792 = vmatprep.mubr.f32.mxu0 0.0
    %793 = vmatmul.mubr.f32.gmra.mrb[0].mxu0 %v653
    %v794 = vpop.f32.mrb[0].mxu0
    %v795 = vadd.f32 0.0, %v794
    %v796 = vpop.f32.mrb[0].mxu0
    %797 = vmatprep.mubr.f32.mxu0 0.0
    %798 = vmatmul.mubr.f32.gmra.mrb[0].mxu0 %v656
    %v799 = vpop.f32.mrb[0].mxu0
    %v800 = vadd.f32 0.0, %v799
    %v801 = vpop.f32.mrb[0].mxu0
    %802 = vmatprep.mubr.f32.mxu0 0.0
    %803 = vmatmul.mubr.f32.gmra.mrb[0].mxu0 %v659
    %v804 = vpop.f32.mrb[0].mxu0
    %v805 = vadd.f32 0.0, %v804
    %v806 = vpop.f32.mrb[0].mxu0
    %807 = vmatprep.mubr.f32.mxu0 0.0
    %808 = vmatmul.mubr.f32.gmra.mrb[0].mxu0 %v662
    %v809 = vpop.f32.mrb[0].mxu0
    %v810 = vadd.f32 0.0, %v809
    %v811 = vpop.f32.mrb[0].mxu0
    %812 = vdwg.mxu0
    %v813 = vadd.f32 %v735, %v740
    %v814 = vadd.f32 %v813, %v745
    %v815 = vadd.f32 %v814, %v750
    %v816 = vadd.f32 %v815, %v755
    %v817 = vadd.f32 %v816, %v760
    %v818 = vadd.f32 %v817, %v765
    %v819 = vadd.f32 %v818, %v770
    %v820 = vrot.slane %v819, 4
    %v821 = vadd.f32 %v819, %v820
    %v822 = vrot.slane %v821, 2
    %v823 = vadd.f32 %v821, %v822
    %v824 = vrot.slane %v823, 1
    %v825 = vadd.f32 %v823, %v824
    %v826 = vmul.f32 %v735, %v735
    %v827 = vmul.f32 %v740, %v740
    %v828 = vmul.f32 %v745, %v745
    %v829 = vmul.f32 %v750, %v750
    %v830 = vmul.f32 %v755, %v755
    %v831 = vmul.f32 %v760, %v760
    %v832 = vmul.f32 %v765, %v765
    %v833 = vmul.f32 %v770, %v770
    %v834 = vadd.f32 %v826, %v827
    %v835 = vadd.f32 %v834, %v828
    %v836 = vadd.f32 %v835, %v829
    %v837 = vadd.f32 %v836, %v830
    %v838 = vadd.f32 %v837, %v831
    %v839 = vadd.f32 %v838, %v832
    %v840 = vadd.f32 %v839, %v833
    %v841 = vrot.slane %v840, 4
    %v842 = vadd.f32 %v840, %v841
    %v843 = vrot.slane %v842, 2
    %v844 = vadd.f32 %v842, %v843
    %v845 = vrot.slane %v844, 1
    %v846 = vadd.f32 %v844, %v845
    %v847 = vmul.f32 %v825, 0.015625
    %v848 = vmul.f32 %v846, 0.015625
    %v849 = vmul.f32 %v847, %v847
    %v850 = vsub.f32 %v848, %v849
    %v851 = vmax.f32 %v850, 0.0
    %v852 = vsub.f32 %v735, %v847
    %v853 = vsub.f32 %v740, %v847
    %v854 = vsub.f32 %v745, %v847
    %v855 = vsub.f32 %v750, %v847
    %v856 = vsub.f32 %v755, %v847
    %v857 = vsub.f32 %v760, %v847
    %v858 = vsub.f32 %v765, %v847
    %v859 = vsub.f32 %v770, %v847
    %v860 = vadd.f32 %v851, 1e-05
    %v861 = vrsqrt.pop %v860
    %v862 = vmul.f32 %v852, %v861
    %v863 = vmul.f32 %v853, %v861
    %v864 = vmul.f32 %v854, %v861
    %v865 = vmul.f32 %v855, %v861
    %v866 = vmul.f32 %v856, %v861
    %v867 = vmul.f32 %v857, %v861
    %v868 = vmul.f32 %v858, %v861
    %v869 = vmul.f32 %v859, %v861
    %v870 = vmax.f32 %v862, 0.0
    %v871 = vmax.f32 %v863, 0.0
    %v872 = vmax.f32 %v864, 0.0
    %v873 = vmax.f32 %v865, 0.0
    %v874 = vmax.f32 %v866, 0.0
    %v875 = vmax.f32 %v867, 0.0
    %v876 = vmax.f32 %v868, 0.0
    %v877 = vmax.f32 %v869, 0.0
    %878 = vst [vmem:[#allocation2] sm:$0xff] %v870
    %879 = vst [vmem:[#allocation2 + $0x8] sm:$0xff] %v871
    %880 = vst [vmem:[#allocation2 + $0x10] sm:$0xff] %v872
    %881 = vst [vmem:[#allocation2 + $0x18] sm:$0xff] %v873
    %882 = vst [vmem:[#allocation2 + $0x20] sm:$0xff] %v874
    %883 = vst [vmem:[#allocation2 + $0x28] sm:$0xff] %v875
    %884 = vst [vmem:[#allocation2 + $0x30] sm:$0xff] %v876
    %885 = vst [vmem:[#allocation2 + $0x38] sm:$0xff] %v877
    %v886 = vadd.f32 %v775, %v780
    %v887 = vadd.f32 %v886, %v785
    %v888 = vadd.f32 %v887, %v790
    %v889 = vadd.f32 %v888, %v795
    %v890 = vadd.f32 %v889, %v800
    %v891 = vadd.f32 %v890, %v805
    %v892 = vadd.f32 %v891, %v810
    %v893 = vrot.slane %v892, 4
    %v894 = vadd.f32 %v892, %v893
    %v895 = vrot.slane %v894, 2
    %v896 = vadd.f32 %v894, %v895
    %v897 = vrot.slane %v896, 1
    %v898 = vadd.f32 %v896, %v897
    %v899 = vmul.f32 %v775, %v775
    %v900 = vmul.f32 %v780, %v780
    %v901 = vmul.f32 %v785, %v785
    %v902 = vmul.f32 %v790, %v790
    %v903 = vmul.f32 %v795, %v795
    %v904 = vmul.f32 %v800, %v800
    %v905 = vmul.f32 %v805, %v805
    %v906 = vmul.f32 %v810, %v810
    %v907 = vadd.f32 %v899, %v900
    %v908 = vadd.f32 %v907, %v901
    %v909 = vadd.f32 %v908, %v902
    %v910 = vadd.f32 %v909, %v903
    %v911 = vadd.f32 %v910, %v904
    %v912 = vadd.f32 %v911, %v905
    %v913 = vadd.f32 %v912, %v906
    %v914 = vrot.slane %v913, 4
    %v915 = vadd.f32 %v913, %v914
    %v916 = vrot.slane %v915, 2
    %v917 = vadd.f32 %v915, %v916
    %v918 = vrot.slane %v917, 1
    %v919 = vadd.f32 %v917, %v918
    %v920 = vmul.f32 %v898, 0.015625
    %v921 = vmul.f32 %v919, 0.015625
    %v922 = vmul.f32 %v920, %v920
    %v923 = vsub.f32 %v921, %v922
    %v924 = vmax.f32 %v923, 0.0
    %v925 = vsub.f32 %v775, %v920
    %v926 = vsub.f32 %v780, %v920
    %v927 = vsub.f32 %v785, %v920
    %v928 = vsub.f32 %v790, %v920
    %v929 = vsub.f32 %v795, %v920
    %v930 = vsub.f32 %v800, %v920
    %v931 = vsub.f32 %v805, %v920
    %v932 = vsub.f32 %v810, %v920
    %v933 = vadd.f32 %v924, 1e-05
    %v934 = vrsqrt.pop %v933
    %v935 = vmul.f32 %v925, %v934
    %v936 = vmul.f32 %v926, %v934
    %v937 = vmul.f32 %v927, %v934
    %v938 = vmul.f32 %v928, %v934
    %v939 = vmul.f32 %v929, %v934
    %v940 = vmul.f32 %v930, %v934
    %v941 = vmul.f32 %v931, %v934
    %v942 = vmul.f32 %v932, %v934
    %v943 = vmax.f32 %v935, 0.0
    %v944 = vmax.f32 %v936, 0.0
    %v945 = vmax.f32 %v937, 0.0
    %v946 = vmax.f32 %v938, 0.0
    %v947 = vmax.f32 %v939, 0.0
    %v948 = vmax.f32 %v940, 0.0
    %v949 = vmax.f32 %v941, 0.0
    %v950 = vmax.f32 %v942, 0.0
    %s951 = scalar_lea.vmem [#allocation2], 64
    %952 = vst [vmem:[%s951] sm:$0xff] %v943
    %953 = vst [vmem:[%s951 + $0x8] sm:$0xff] %v944
    %954 = vst [vmem:[%s951 + $0x10] sm:$0xff] %v945
    %955 = vst [vmem:[%s951 + $0x18] sm:$0xff] %v946
    %956 = vst [vmem:[%s951 + $0x20] sm:$0xff] %v947
    %957 = vst [vmem:[%s951 + $0x28] sm:$0xff] %v948
    %958 = vst [vmem:[%s951 + $0x30] sm:$0xff] %v949
    %959 = vst [vmem:[%s951 + $0x38] sm:$0xff] %v950
    // Predicated region
    $region10: #{tpu_custom_call.1} parent=1 // pred_check
      _
    $region11: #{tpu_custom_call.1} parent=1 // pred_check_branch
      %961 = sbr.rel (0) target = $region13
    $region12: #{tpu_custom_call.1} parent=1 // pred_region
      %s963 = ssub.s32 2048, 2048
      %964 = vsyncadd [#allocation3], %s963
      %s965 = sshll.u32 [#allocation2], 4
      %s966 = int_to_ptr.vmem [resolvable:$true] %s965
      %971 = dma.vmem_to_hbm [thread:$0]  %s966, 2048, %s2, [#allocation3], 128, 128, 8
    $region13: #{tpu_custom_call.1} parent=1 // pred_fallthru
      _
    // Predicated region
    $region14: #{tpu_custom_call.1} parent=1 // pred_check
      _
    $region15: #{tpu_custom_call.1} parent=1 // pred_check_branch
      %973 = sbr.rel (0) target = $region17
    $region16: #{tpu_custom_call.1} parent=1 // pred_region
      %974 = dma.done [#allocation3], 2048
    $region17: #{tpu_custom_call.1} parent=1 // pred_fallthru
      _
    %975 = vsyncpa [#allocation3], 1

</llo_original>
